<compile_context>
chip_gen: v5e
topology: v5e:2x2
jax: 0.10.0
libtpu: 0.0.40
codegen_flags: <defaults>
</compile_context>

<pallas_src>
import jax
import jax.numpy as jnp
from jax.experimental import pallas as pl
from jax.experimental.pallas import tpu as pltpu


# ---------------------------------------------------------------------------
# Hardware-aware sizing helpers
# ---------------------------------------------------------------------------

def _vmem_capacity_bytes():
    """Physical VMEM of the attached TPU (64 MiB on v7x, 128 MiB on v5e/v6e)."""
    try:
        cap = getattr(pltpu.get_tpu_info(), "vmem_capacity_bytes", None)
        if cap:
            return int(cap)
    except Exception:
        pass
    return 64 * 1024 * 1024          # conservative default (v7x-sized)


def _vmem_limit_bytes():
    """Scoped VMEM limit handed to Mosaic (leave headroom below physical)."""
    return int(min(_vmem_capacity_bytes() * 3 // 4, 100 * 1024 * 1024))


def _pick_tile_n(N, K, w_itemsize=2, max_batch_tile=256):
    """Largest lane-dense weight-column slab tn whose double-buffered weight
    copies (plus activation / output / bias buffers) fit the scoped VMEM
    budget of the current TPU generation."""
    limit = _vmem_limit_bytes()
    # Reserve: cur+next activation scratch (bf16), 2x input block (bf16),
    # 2x output block upper bound (f32), bias, headroom.
    reserve = (2 * max_batch_tile * N * 2            # ping-pong activations
               + 2 * max_batch_tile * K * 2          # input x blocks
               + 2 * max_batch_tile * N * 4          # output blocks (upper bound)
               + 2 * N * 4                           # bias blocks
               + (2 << 20))                          # slack
    per_buf = max((limit - reserve) // 2, K * 128 * w_itemsize)
    for tn in (2560, 2048, 1536, 1280, 1024, 768, 512, 384, 256, 128):
        if tn <= N and N % tn == 0 and K * tn * w_itemsize <= per_buf:
            return tn
    # TODO(synk): pad N for huge feature dims with no 128-divisible slab that
    # fits VMEM; the original module (N = 5120) never reaches this fallback.
    return N


# ---------------------------------------------------------------------------
# Fused 10-layer linear+ReLU kernel
# ---------------------------------------------------------------------------

def _fused_mlp_kernel(x_ref, w_ref, b_ref, o_ref, cur_ref, nxt_ref):
    """Grid = (m, l, j):  m = batch tile, l = layer, j = weight-column slab.

    cur_ref holds layer l's input activation (bf16), nxt_ref accumulates
    layer l's output slab-by-slab; at the start of the next layer (j == 0)
    nxt is copied into cur.  Only weights stream from HBM per step.
    """
    l = pl.program_id(1)
    j = pl.program_id(2)
    tn = w_ref.shape[1]

    # Layer 0: load this M-tile's input activation into the carry buffer.
    @pl.when(jnp.logical_and(l == 0, j == 0))
    def _():
        cur_ref[...] = x_ref[...].astype(cur_ref.dtype)

    # Layers 1..L-1: previous layer's output becomes this layer's input.
    @pl.when(jnp.logical_and(l > 0, j == 0))
    def _():
        cur_ref[...] = nxt_ref[...]

    # One long full-K dot per slab: bf16 operands, f32 accumulation (MXU).
    acc = jnp.dot(cur_ref[...], w_ref[...], preferred_element_type=jnp.float32)
    y = jnp.maximum(acc + b_ref[...], 0.0)           # bias + ReLU epilogue

    # Final result (last layer's writeback is the last one per output block,
    # so unconditional writes are correct; intermediate writebacks are tiny
    # compared to the weight stream).
    o_ref[...] = y.astype(o_ref.dtype)

    # Carry the activation slab for the next layer (bf16, VMEM only).
    col = pl.multiple_of(j * tn, tn)
    nxt_ref[:, pl.ds(col, tn)] = y.astype(nxt_ref.dtype)


# ---------------------------------------------------------------------------
# Wrapper
# ---------------------------------------------------------------------------

def test_model_forward(x, w_stacked, b_stacked):
    """Full TestModel forward in a single fused pallas_call.

    x         : [M, F]  float32
    w_stacked : [L, N_slabs, F, tn]  bfloat16   (slab-contiguous weights)
    b_stacked : [L, 1, F]  float32
    returns   : [M, F]  float32
    """
    L, nslabs, K, tn = w_stacked.shape
    N = nslabs * tn
    M = x.shape[0]
    assert x.shape[1] == K and K == N, (
        "fused kernel requires square, equal-sized layers (as in TestModel)")

    # Cast once in the wrapper; activations are carried in bf16 thereafter.
    x = x.astype(jnp.bfloat16)

    # M tiling: full-M block for small batch, 256-row tiles otherwise
    # (256 matches the v6e/v7x 256x256 MXU; harmless on v5e).
    if M <= 256:
        tm, M_pad = M, M
    else:
        tm = 256
        M_pad = pl.cdiv(M, tm) * tm
    if M_pad != M:
        # TODO(synk): padded rows compute relu(bias) and are sliced off; mask
        # them if batch padding ever becomes large.
        x = jnp.pad(x, ((0, M_pad - M), (0, 0)))
    m_tiles = M_pad // tm

    cost = pl.CostEstimate(
        flops=2 * M_pad * K * N * L,
        transcendentals=0,
        bytes_accessed=(
            m_tiles * L * K * N * w_stacked.dtype.itemsize   # weights (re-streamed per M tile)
            + L * N * 4                                      # biases
            + M_pad * K * x.dtype.itemsize                   # input activations
            + M_pad * N * 4                                  # final output
        ),
    )

    out = pl.pallas_call(
        _fused_mlp_kernel,
        out_shape=jax.ShapeDtypeStruct((M_pad, N), jnp.float32),
        grid_spec=pltpu.PrefetchScalarGridSpec(
            num_scalar_prefetch=0,
            grid=(m_tiles, L, nslabs),
            in_specs=[
                # Input activations: one block per M tile, resident across layers.
                pl.BlockSpec((tm, K), lambda m, l, j: (m, 0)),
                # Slab-contiguous weights: one contiguous (K, tn) slab per step.
                pl.BlockSpec((pl.Squeezed(), pl.Squeezed(), K, tn),
                             lambda m, l, j: (l, j, 0, 0)),
                # Bias slab.
                pl.BlockSpec((pl.Squeezed(), 1, tn), lambda m, l, j: (l, 0, j)),
            ],
            out_specs=pl.BlockSpec((tm, tn), lambda m, l, j: (m, j)),
            scratch_shapes=[
                pltpu.VMEM((tm, N), jnp.bfloat16),   # current layer input
                pltpu.VMEM((tm, N), jnp.bfloat16),   # next layer input (built per slab)
            ],
        ),
        compiler_params=pltpu.CompilerParams(
            dimension_semantics=("parallel", "arbitrary", "arbitrary"),
            vmem_limit_bytes=_vmem_limit_bytes(),
        ),
        cost_estimate=cost,
    )(x, w_stacked, b_stacked)

    if M_pad != M:
        out = out[:M]
    return out


# ---------------------------------------------------------------------------
# Parameter construction / packing
# ---------------------------------------------------------------------------

def init_params(key, features, num_layers=10):
    """Deterministic synthetic parameters matching TestModel's 10 square layers.

    Returns a list of (W [F, F] f32, b [F] f32), with W already transposed to
    the y = x @ W + b layout and nn.Linear-style uniform init range.
    """
    params = []
    for _ in range(num_layers):
        key, kw, kb = jax.random.split(key, 3)
        bound = 1.0 / jnp.sqrt(features)
        w = jax.random.uniform(kw, (features, features), jnp.float32, -bound, bound)
        b = jax.random.uniform(kb, (features,), jnp.float32, -bound, bound)
        params.append((w, b))
    return params


def pack_params(params, tn=None, max_batch_tile=256):
    """Pack per-layer (W, b) into the fused kernel's slab-contiguous layout.

    Returns (w_stacked [L, N_slabs, K, tn] bf16, b_stacked [L, 1, N] f32).
    Done once, outside jit, so the layout transform is not paid per forward.
    """
    L = len(params)
    K, N = params[0][0].shape
    for w, b in params:
        assert w.shape == (K, N) and b.shape == (N,)
    assert K == N, "TestModel layers are square"
    if tn is None:
        tn = _pick_tile_n(N, K, w_itemsize=2, max_batch_tile=max_batch_tile)
    assert N % tn == 0
    nslabs = N // tn
    w_stacked = jnp.stack([
        w.astype(jnp.bfloat16).reshape(K, nslabs, tn).transpose(1, 0, 2)
        for w, _ in params
    ])                                              # (L, nslabs, K, tn)
    b_stacked = jnp.stack([
        b.astype(jnp.float32).reshape(1, N) for _, b in params
    ])                                              # (L, 1, N)
    return w_stacked, b_stacked


def _reference_forward(x, params):
    """Pure-jnp reference with the same bf16-operand / f32-accumulate numerics."""
    act = x
    for w, b in params:
        y = jnp.dot(act.astype(jnp.bfloat16), w.astype(jnp.bfloat16),
                    preferred_element_type=jnp.float32) + b
        act = jnp.maximum(y, 0.0)
    return act


# ---------------------------------------------------------------------------
# Self-test (small shapes consistent with the module; production F = 5120)
# ---------------------------------------------------------------------------

if __name__ == "__main__":
    batch = 8
    features = 1280          # scaled-down stand-in for 5120 (multiple of 128)
    num_layers = 10

    key = jax.random.PRNGKey(0)
    key, kx = jax.random.split(key)
    x = jax.random.normal(kx, (batch, features), jnp.float32)
    params = init_params(key, features, num_layers)

    # 1) Force a small slab (tn=256 -> 5 slabs/layer) to exercise the general
    #    multi-slab path (slab-indexed carry writes, output-block revisits).
    w_multi, b_multi = pack_params(params, tn=256)
    y_multi = jax.jit(test_model_forward)(x, w_multi, b_multi)
    jax.block_until_ready(y_multi)

    # 2) Auto-selected slab width (single full-width slab at this small F).
    w_auto, b_auto = pack_params(params)
    y_auto = jax.jit(test_model_forward)(x, w_auto, b_auto)
    jax.block_until_ready(y_auto)

    y_ref = jax.jit(_reference_forward)(x, params)
    jax.block_until_ready(y_ref)

    def max_rel_err(a, b):
        return float(jnp.max(jnp.abs(a - b)) / (jnp.max(jnp.abs(b)) + 1e-6))

    for y in (y_multi, y_auto):
        assert y.shape == (batch, features)
        assert bool(jnp.all(jnp.isfinite(y)))
        assert bool(jnp.all(y >= 0.0))                    # final ReLU applied
        err = max_rel_err(y, y_ref)
        assert err < 5e-2, f"relative error vs reference too large: {err}"

    cross = max_rel_err(y_multi, y_auto)
    assert cross < 1e-2, f"slab-width configs disagree: {cross}"

    print("KERNEL_OK")
</pallas_src>

<mosaic_0001>
module attributes {stable_mosaic.version = 11 : i64} {
  func.func @_fused_mlp_kernel(%arg0: i32, %arg1: i32, %arg2: i32, %arg3: memref<8x1280xbf16, #tpu.memory_space<vmem>>, %arg4: memref<1x1x1280x256xbf16, #tpu.memory_space<vmem>>, %arg5: memref<1x1x256xf32, #tpu.memory_space<vmem>>, %arg6: memref<8x256xf32, #tpu.memory_space<vmem>>, %arg7: memref<8x1280xbf16, #tpu.memory_space<vmem>>, %arg8: memref<8x1280xbf16, #tpu.memory_space<vmem>>) attributes {dimension_semantics = [#tpu.dimension_semantics<parallel>, #tpu.dimension_semantics<arbitrary>, #tpu.dimension_semantics<arbitrary>], iteration_bounds = array<i64: 1, 10, 5>, scalar_prefetch = 0 : i64, scratch_operands = 2 : i64, tpu.core_type = #tpu.core_type<tc>, window_params = [{transform_indices = @transform_0, window_bounds = array<i64: 8, 1280>}, {transform_indices = @transform_1, window_bounds = array<i64: 1, 1, 1280, 256>}, {transform_indices = @transform_2, window_bounds = array<i64: 1, 1, 256>}, {transform_indices = @transform_3, window_bounds = array<i64: 8, 256>}]} {
    %c0_i32 = arith.constant 0 : i32
    %0 = arith.cmpi eq, %arg1, %c0_i32 : i32
    %c0_i32_0 = arith.constant 0 : i32
    %1 = arith.cmpi eq, %arg2, %c0_i32_0 : i32
    %2 = arith.andi %0, %1 : i1
    %3 = arith.extui %2 : i1 to i32
    %c0_i32_1 = arith.constant 0 : i32
    %4 = arith.cmpi ne, %3, %c0_i32_1 : i32
    scf.if %4 {
      %c0_17 = arith.constant 0 : index
      %c0_18 = arith.constant 0 : index
      %26 = vector.load %arg3[%c0_17, %c0_18] : memref<8x1280xbf16, #tpu.memory_space<vmem>>, vector<8x1280xbf16>
      %c0_19 = arith.constant 0 : index
      %c0_20 = arith.constant 0 : index
      %27 = vector.load %arg7[%c0_19, %c0_20] : memref<8x1280xbf16, #tpu.memory_space<vmem>>, vector<8x1280xbf16>
      tpu.vector_store %arg7[%c0_19, %c0_20], %26 {strides = array<i32>} : memref<8x1280xbf16, #tpu.memory_space<vmem>>, vector<8x1280xbf16>,
    } else {
    }
    %c0_i32_2 = arith.constant 0 : i32
    %5 = arith.cmpi sgt, %arg1, %c0_i32_2 : i32
    %c0_i32_3 = arith.constant 0 : i32
    %6 = arith.cmpi eq, %arg2, %c0_i32_3 : i32
    %7 = arith.andi %5, %6 : i1
    %8 = arith.extui %7 : i1 to i32
    %c0_i32_4 = arith.constant 0 : i32
    %9 = arith.cmpi ne, %8, %c0_i32_4 : i32
    scf.if %9 {
      %c0_17 = arith.constant 0 : index
      %c0_18 = arith.constant 0 : index
      %26 = vector.load %arg8[%c0_17, %c0_18] : memref<8x1280xbf16, #tpu.memory_space<vmem>>, vector<8x1280xbf16>
      %c0_19 = arith.constant 0 : index
      %c0_20 = arith.constant 0 : index
      %27 = vector.load %arg7[%c0_19, %c0_20] : memref<8x1280xbf16, #tpu.memory_space<vmem>>, vector<8x1280xbf16>
      tpu.vector_store %arg7[%c0_19, %c0_20], %26 {strides = array<i32>} : memref<8x1280xbf16, #tpu.memory_space<vmem>>, vector<8x1280xbf16>,
    } else {
    }
    %c0 = arith.constant 0 : index
    %c0_5 = arith.constant 0 : index
    %10 = vector.load %arg7[%c0, %c0_5] : memref<8x1280xbf16, #tpu.memory_space<vmem>>, vector<8x1280xbf16>
    %c0_6 = arith.constant 0 : index
    %c0_7 = arith.constant 0 : index
    %c0_8 = arith.constant 0 : index
    %c0_9 = arith.constant 0 : index
    %11 = vector.load %arg4[%c0_6, %c0_7, %c0_8, %c0_9] : memref<1x1x1280x256xbf16, #tpu.memory_space<vmem>>, vector<1x1x1280x256xbf16>
    %12 = vector.shape_cast %11 : vector<1x1x1280x256xbf16> to vector<1280x256xbf16>
    %cst = arith.constant dense<0.000000e+00> : vector<8x256xf32>
    %13 = tpu.matmul %10, %12, %cst {dimension_numbers = #tpu.dot_dimension_numbers<[1], [0], [0], [1], [0, 0, 1, 1], [], []>} : vector<8x1280xbf16>, vector<1280x256xbf16>, vector<8x256xf32> -> vector<8x256xf32>
    %c0_10 = arith.constant 0 : index
    %c0_11 = arith.constant 0 : index
    %c0_12 = arith.constant 0 : index
    %14 = vector.load %arg5[%c0_10, %c0_11, %c0_12] : memref<1x1x256xf32, #tpu.memory_space<vmem>>, vector<1x1x256xf32>
    %15 = vector.shape_cast %14 : vector<1x1x256xf32> to vector<1x256xf32>
    %16 = vector.broadcast %15 : vector<1x256xf32> to vector<8x256xf32>
    %17 = arith.addf %13, %16 : vector<8x256xf32>
    %cst_13 = arith.constant 0.000000e+00 : f32
    %18 = vector.broadcast %cst_13 : f32 to vector<8x256xf32>
    %19 = arith.maximumf %17, %18 : vector<8x256xf32>
    %c0_14 = arith.constant 0 : index
    %c0_15 = arith.constant 0 : index
    %20 = vector.load %arg6[%c0_14, %c0_15] : memref<8x256xf32, #tpu.memory_space<vmem>>, vector<8x256xf32>
    tpu.vector_store %arg6[%c0_14, %c0_15], %19 {strides = array<i32>} : memref<8x256xf32, #tpu.memory_space<vmem>>, vector<8x256xf32>,
    %c256_i32 = arith.constant 256 : i32
    %21 = arith.muli %arg2, %c256_i32 : i32
    %22 = tpu.assume_multiple %21, 256 : i32
    %23 = arith.truncf %19 : vector<8x256xf32> to vector<8x256xbf16>
    %c0_16 = arith.constant 0 : index
    %24 = arith.index_cast %22 : i32 to index
    %25 = vector.load %arg8[%c0_16, %24] : memref<8x1280xbf16, #tpu.memory_space<vmem>>, vector<8x256xbf16>
    tpu.vector_store %arg8[%c0_16, %24], %23 {strides = array<i32>} : memref<8x1280xbf16, #tpu.memory_space<vmem>>, vector<8x256xbf16>,
    return
  }
  func.func @transform_0(%arg0: i32, %arg1: i32, %arg2: i32) -> (i32, i32) {
    %c0_i32 = arith.constant 0 : i32
    %c0_i32_0 = arith.constant 0 : i32
    return %arg0, %c0_i32 : i32, i32
  }
  func.func @transform_1(%arg0: i32, %arg1: i32, %arg2: i32) -> (i32, i32, i32, i32) {
    %c0_i32 = arith.constant 0 : i32
    %c0_i32_0 = arith.constant 0 : i32
    %c0_i32_1 = arith.constant 0 : i32
    return %arg1, %arg2, %c0_i32, %c0_i32_0 : i32, i32, i32, i32
  }
  func.func @transform_2(%arg0: i32, %arg1: i32, %arg2: i32) -> (i32, i32, i32) {
    %c0_i32 = arith.constant 0 : i32
    %c0_i32_0 = arith.constant 0 : i32
    return %arg1, %c0_i32, %arg2 : i32, i32, i32
  }
  func.func @transform_3(%arg0: i32, %arg1: i32, %arg2: i32) -> (i32, i32) {
    %c0_i32 = arith.constant 0 : i32
    return %arg0, %arg2 : i32, i32
  }
}

</mosaic_0001>

<llo_original>
// kernel: test_model_forward.1
$region0: #{test_model_forward.1}
  #allocation0 [shape = 'u32[]', space=smem, size = 0x4, offset = 0x4, fixed_abs, tag = 'smem constant byte address 0x4 - core index']
  #allocation1 [shape = 'u32[72,128]{1,0:T(1,128)}', space=vmem, size = 0x9000, scoped, tag = 'internal scratch']
  #allocation2 [shape = 'bf16[8,1280]{1,0:T(8,128)(2,1)}', space=vmem, size = 0x5000, scoped, tag = 'scratch operand']
  #allocation3 [shape = 'bf16[8,1280]{1,0:T(8,128)(2,1)}', space=vmem, size = 0x5000, scoped, tag = 'scratch operand']
  %s0 = inlined_call_operand.vmem [shape: bf16[8,1280], index: 0, kind: input, shape index: {}]
  %s1 = inlined_call_operand.hbm [shape: bf16[10,5,1280,256], index: 1, kind: input, shape index: {}]
  %s2 = inlined_call_operand.hbm [shape: f32[10,1,1280], index: 2, kind: input, shape index: {}]
  %s3 = inlined_call_operand.hbm [shape: f32[8,1280], index: 3, kind: output, shape index: {}]
  %s4 = sld [smem:[#allocation0]]
  $region61: #{test_model_forward.1} parent=0
    _
  %s6 = ssub.s32 1, %s4
  %s7 = scalar_select 0, %s6, %s4
  $region1: #{test_model_forward.1} parent=0
    #allocation4 [shape = 'u8[1310720]{0}', space=vmem, size = 0x140000, scoped, tag = 'input window, operand 1']
    #allocation5 [shape = 's32[2]{0}', space=sflag, size = 0x8, scoped, tag = 'scoped memory for test_model_forward.1']
    #allocation6 [shape = 's32[2]{0}', space=sflag, size = 0x8, scoped, tag = 'scoped memory for test_model_forward.1']
    #allocation7 [shape = 'u8[2048]{0}', space=vmem, size = 0x800, scoped, tag = 'input window, operand 2']
    #allocation8 [shape = 's32[2]{0}', space=sflag, size = 0x8, scoped, tag = 'scoped memory for test_model_forward.1']
    #allocation9 [shape = 'u8[16384]{0}', space=vmem, size = 0x4000, scoped, tag = 'output window, operand 0']
    %8 = vsyncpa [#allocation5], 0
    %s9 = scalar_lea.sflag [#allocation5], 1
    %10 = vsyncpa %s9, 0
    %11 = vsyncpa [#allocation8], 0
    %s12 = scalar_lea.sflag [#allocation8], 1
    %13 = vsyncpa %s12, 0
    %14 = vsyncpa [#allocation6], 0
    %s15 = scalar_lea.sflag [#allocation6], 1
    %16 = vsyncpa %s15, 0
    loop: start=0, step=1, limit=52
    $region2: #{test_model_forward.1} parent=1 // loop_pre_header
      _
    $region3: #{test_model_forward.1} parent=1 // loop_header
      %s18 = sphi 0, %s22
      %p19 = scmp.ge.s32.totalorder %s18, 52
      %s25 = sphi 0, %s44
      %s26 = sphi 0, %s40
      %s27 = sphi 0, %s36
      %s28 = sphi 0, %s25
      %s29 = sphi 0, %s26
      %s30 = sphi 0, %s27
      %s31 = sphi 0, %s28
      %s32 = sphi 0, %s29
      %s33 = sphi 0, %s30
      %s47 = sphi 0, %s49
      %s50 = sphi 0, %s47
      %s51 = sphi 0, %s50
      %s67 = sphi 0, %s51
      %s75 = sphi 0, %s77
      %s78 = sphi 0, %s75
      %s79 = sphi 0, %s78
      %s95 = sphi 0, %s79
      %s103 = sphi 0, %s105
      %s106 = sphi 0, %s103
      %s107 = sphi 0, %s106
      %s123 = sphi 0, %s107
      %s131 = sphi 0, %s133
      %s134 = sphi 0, %s131
      %s135 = sphi 0, %s134
      %s151 = sphi 0, %s135
    $region4: #{test_model_forward.1} parent=1 // loop_header_branch
      %21 = sbr.rel (%p19) target = $region8
    $region5: #{test_model_forward.1} parent=1 // loop_body
      %s23 = ssub.s32 %s18, 1
      %s24 = ssub.s32 %s18, 2
      %s34 = sadd.s32 1, %s27
      %p35 = scmp.ge.s32.totalorder %s34, 5
      %s36 = scalar_select %p35, 0, %s34
      %s37 = sadd.s32 1, %s26
      %s38 = scalar_select %p35, %s37, %s26
      %p39 = scmp.ge.s32.totalorder %s38, 10
      %s40 = scalar_select %p39, 0, %s38
      %s41 = sadd.s32 1, %s25
      %s42 = scalar_select %p39, %s41, %s25
      %p43 = scmp.ge.s32.totalorder %s42, 1
      %s44 = scalar_select %p43, 0, %s42
      %s45 = ssub.s32 %s25, %s44
      %p46 = scmp.eq.s32.totalorder %s45, 0
      %s48 = sadd.s32 %s47, 1
      %s49 = scalar_select %p46, %s47, %s48
      %p52 = pneg %p46
      %p53 = scmp.eq.s32.totalorder %s18, 49
      %p54 = por %p52, %p53
      %p55 = scmp.ne.s32.totalorder %s47, %s50
      %p56 = scmp.eq.s32.totalorder %s18, 0
      %p57 = por %p55, %p56
      %p58 = scmp.ne.s32.totalorder %s47, %s50
      %p59 = scmp.eq.s32.totalorder %s23, 49
      %p60 = por %p58, %p59
      %p61 = scmp.ne.s32.totalorder %s50, %s51
      %p62 = scmp.eq.s32.totalorder %s23, 0
      %p63 = por %p61, %p62
      %p64 = scmp.ne.s32.totalorder %s50, %s51
      %p65 = scmp.eq.s32.totalorder %s24, 49
      %p66 = por %p64, %p65
      %p68 = scmp.ne.s32.totalorder %s51, %s67
      %p69 = scmp.eq.s32.totalorder %s24, 0
      %p70 = por %p68, %p69
      %s71 = ssub.s32 %s26, %s40
      %s72 = ssub.s32 %s27, %s36
      %s73 = sor.u32 %s71, %s72
      %p74 = scmp.eq.s32.totalorder %s73, 0
      %s76 = sadd.s32 %s75, 1
      %s77 = scalar_select %p74, %s75, %s76
      %p80 = pneg %p74
      %p81 = scmp.eq.s32.totalorder %s18, 49
      %p82 = por %p80, %p81
      %p83 = scmp.ne.s32.totalorder %s75, %s78
      %p84 = scmp.eq.s32.totalorder %s18, 0
      %p85 = por %p83, %p84
      %p86 = scmp.ne.s32.totalorder %s75, %s78
      %p87 = scmp.eq.s32.totalorder %s23, 49
      %p88 = por %p86, %p87
      %p89 = scmp.ne.s32.totalorder %s78, %s79
      %p90 = scmp.eq.s32.totalorder %s23, 0
      %p91 = por %p89, %p90
      %p92 = scmp.ne.s32.totalorder %s78, %s79
      %p93 = scmp.eq.s32.totalorder %s24, 49
      %p94 = por %p92, %p93
      %p96 = scmp.ne.s32.totalorder %s79, %s95
      %p97 = scmp.eq.s32.totalorder %s24, 0
      %p98 = por %p96, %p97
      %s99 = ssub.s32 %s26, %s40
      %s100 = ssub.s32 %s27, %s36
      %s101 = sor.u32 %s99, %s100
      %p102 = scmp.eq.s32.totalorder %s101, 0
      %s104 = sadd.s32 %s103, 1
      %s105 = scalar_select %p102, %s103, %s104
      %p108 = pneg %p102
      %p109 = scmp.eq.s32.totalorder %s18, 49
      %p110 = por %p108, %p109
      %p111 = scmp.ne.s32.totalorder %s103, %s106
      %p112 = scmp.eq.s32.totalorder %s18, 0
      %p113 = por %p111, %p112
      %p114 = scmp.ne.s32.totalorder %s103, %s106
      %p115 = scmp.eq.s32.totalorder %s23, 49
      %p116 = por %p114, %p115
      %p117 = scmp.ne.s32.totalorder %s106, %s107
      %p118 = scmp.eq.s32.totalorder %s23, 0
      %p119 = por %p117, %p118
      %p120 = scmp.ne.s32.totalorder %s106, %s107
      %p121 = scmp.eq.s32.totalorder %s24, 49
      %p122 = por %p120, %p121
      %p124 = scmp.ne.s32.totalorder %s107, %s123
      %p125 = scmp.eq.s32.totalorder %s24, 0
      %p126 = por %p124, %p125
      %s127 = ssub.s32 %s25, %s44
      %s128 = ssub.s32 %s27, %s36
      %s129 = sor.u32 %s127, %s128
      %p130 = scmp.eq.s32.totalorder %s129, 0
      %s132 = sadd.s32 %s131, 1
      %s133 = scalar_select %p130, %s131, %s132
      %p136 = pneg %p130
      %p137 = scmp.eq.s32.totalorder %s18, 49
      %p138 = por %p136, %p137
      %p139 = scmp.ne.s32.totalorder %s131, %s134
      %p140 = scmp.eq.s32.totalorder %s18, 0
      %p141 = por %p139, %p140
      %p142 = scmp.ne.s32.totalorder %s131, %s134
      %p143 = scmp.eq.s32.totalorder %s23, 49
      %p144 = por %p142, %p143
      %p145 = scmp.ne.s32.totalorder %s134, %s135
      %p146 = scmp.eq.s32.totalorder %s23, 0
      %p147 = por %p145, %p146
      %p148 = scmp.ne.s32.totalorder %s134, %s135
      %p149 = scmp.eq.s32.totalorder %s24, 49
      %p150 = por %p148, %p149
      %p152 = scmp.ne.s32.totalorder %s135, %s151
      %p153 = scmp.eq.s32.totalorder %s24, 0
      %p154 = por %p152, %p153
      %p155 = scmp.le.s32.totalorder 1, %s18
      %p156 = scmp.lt.s32.totalorder %s18, 51
      %p157 = pnand %p155, %p156
      %p158 = pneg %p157
      // Predicated region
      $region9: #{test_model_forward.1} parent=5 // pred_check
        _
      $region10: #{test_model_forward.1} parent=5 // pred_check_branch
        %160 = sbr.rel (%p157) target = $region12
      $region11: #{test_model_forward.1} parent=5 // pred_region
        %s161 = ssub.s32 %s18, 1
        // Predicated region
        $region13: #{test_model_forward.1} parent=11 // pred_check
          %p162 = pneg %p63
        $region14: #{test_model_forward.1} parent=11 // pred_check_branch
          %164 = sbr.rel (%p162) target = $region16
        $region15: #{test_model_forward.1} parent=11 // pred_region
          %p165 = scmp.lt.s32.totalorder %s28, 0
          %s166 = scalar_select %p165, %s28, 0
          %s167 = smul.addr %s166, 10
          %s168 = smul.addr %s167, 4
          %s169 = scalar_lea.vmem %s0, %s168
        $region16: #{test_model_forward.1} parent=11 // pred_fallthru
          _
      $region12: #{test_model_forward.1} parent=5 // pred_fallthru
        _
      %p170 = scmp.lt.s32.totalorder %s18, 50
      // Predicated region
      $region17: #{test_model_forward.1} parent=5 // pred_check
        %p171 = pneg %p170
      $region18: #{test_model_forward.1} parent=5 // pred_check_branch
        %173 = sbr.rel (%p171) target = $region20
      $region19: #{test_model_forward.1} parent=5 // pred_region
        // Predicated region
        $region21: #{test_model_forward.1} parent=19 // pred_check
          %p174 = pneg %p85
        $region22: #{test_model_forward.1} parent=19 // pred_check_branch
          %176 = sbr.rel (%p174) target = $region24
        $region23: #{test_model_forward.1} parent=19 // pred_region
          %s177 = sand.u32 %s75, 1
          %s178 = scalar_lea.sflag [#allocation5], %s177
          %s179 = sand.u32 %s75, 1
          %s180 = smul.addr %s179, 1280
          %s181 = scalar_lea.vmem [#allocation4], %s180
          %183 = vsyncadd %s178, 0
          %s184 = smul.addr %s27, 320
          %s185 = smul.addr %s26, 1600
          %s186 = sadd.s32 %s184, %s185
          %s187 = smul.addr %s186, 4
          %s188 = scalar_lea.hbm %s1, %s187
          %s189 = sshll.u32 %s188, 4
          %s190 = int_to_ptr.hbm [resolvable:$true] %s189
          %s191 = sshll.u32 %s181, 4
          %s192 = int_to_ptr.vmem [resolvable:$true] %s191
          %197 = dma.hbm_to_vmem [thread:$0]  %s190, 20480, %s192, %s178, 128, 128, 8
        $region24: #{test_model_forward.1} parent=19 // pred_fallthru
          _
        // Predicated region
        $region25: #{test_model_forward.1} parent=19 // pred_check
          %p198 = pneg %p113
        $region26: #{test_model_forward.1} parent=19 // pred_check_branch
          %200 = sbr.rel (%p198) target = $region28
        $region27: #{test_model_forward.1} parent=19 // pred_region
          %s201 = sand.u32 %s103, 1
          %s202 = scalar_lea.sflag [#allocation8], %s201
          %s203 = sand.u32 %s103, 1
          %s204 = smul.addr %s203, 2
          %s205 = scalar_lea.vmem [#allocation7], %s204
          %s206 = smul.u32 2, %s27
          %208 = vsyncadd %s202, 0
          %s209 = smul.addr %s26, 10
          %s210 = sadd.s32 %s206, %s209
          %s211 = scalar_lea.hbm %s2, %s210
          %s213 = sshll.u32 %s211, 4
          %s214 = int_to_ptr.hbm [resolvable:$true] %s213
          %s215 = sshll.u32 %s205, 4
          %s216 = int_to_ptr.vmem [resolvable:$true] %s215
          %218 = dma.hbm_to_vmem [thread:$0]  %s214, 32, %s216, %s202
        $region28: #{test_model_forward.1} parent=19 // pred_fallthru
          _
      $region20: #{test_model_forward.1} parent=5 // pred_fallthru
        _
      %p219 = scmp.le.s32.totalorder 1, %s18
      %p220 = scmp.lt.s32.totalorder %s18, 51
      %p221 = pnand %p219, %p220
      %p222 = pneg %p221
      // Predicated region
      $region29: #{test_model_forward.1} parent=5 // pred_check
        _
      $region30: #{test_model_forward.1} parent=5 // pred_check_branch
        %224 = sbr.rel (%p221) target = $region32
      $region31: #{test_model_forward.1} parent=5 // pred_region
        %s225 = ssub.s32 %s18, 1
        %s226 = sand.u32 %s78, 1
        %s227 = scalar_lea.sflag [#allocation5], %s226
        %s228 = sand.u32 %s78, 1
        %s229 = smul.addr %s228, 1280
        %s230 = scalar_lea.vmem [#allocation4], %s229
        // Predicated region
        $region33: #{test_model_forward.1} parent=31 // pred_check
          %p231 = pneg %p91
        $region34: #{test_model_forward.1} parent=31 // pred_check_branch
          %233 = sbr.rel (%p231) target = $region36
        $region35: #{test_model_forward.1} parent=31 // pred_region
          %235 = dma.done %s227, 20480
        $region36: #{test_model_forward.1} parent=31 // pred_fallthru
          _
        %s236 = sand.u32 %s106, 1
        %s237 = scalar_lea.sflag [#allocation8], %s236
        %s238 = sand.u32 %s106, 1
        %s239 = smul.addr %s238, 2
        %s240 = scalar_lea.vmem [#allocation7], %s239
        // Predicated region
        $region37: #{test_model_forward.1} parent=31 // pred_check
          %p241 = pneg %p119
        $region38: #{test_model_forward.1} parent=31 // pred_check_branch
          %243 = sbr.rel (%p241) target = $region40
        $region39: #{test_model_forward.1} parent=31 // pred_region
          %245 = dma.done %s237, 32
        $region40: #{test_model_forward.1} parent=31 // pred_fallthru
          _
        %p246 = scmp.lt.s32.totalorder %s28, 0
        %s247 = scalar_select %p246, %s28, 0
        %s248 = smul.addr %s247, 10
        %s249 = smul.addr %s248, 4
        %s250 = scalar_lea.vmem %s0, %s249
        %p251 = pneg %p63
        %p252 = pneg %p60
        %s253 = sand.u32 %s78, 1
        %s254 = scalar_lea.sflag [#allocation5], %s253
        %s255 = sand.u32 %s78, 1
        %s256 = smul.addr %s255, 1280
        %s257 = scalar_lea.vmem [#allocation4], %s256
        %p258 = pneg %p91
        %p259 = pneg %p88
        %s260 = sand.u32 %s106, 1
        %s261 = scalar_lea.sflag [#allocation8], %s260
        %s262 = sand.u32 %s106, 1
        %s263 = smul.addr %s262, 2
        %s264 = scalar_lea.vmem [#allocation7], %s263
        %p265 = pneg %p119
        %p266 = pneg %p116
        %p267 = pneg %p147
        %p268 = pneg %p144
        %s269 = sand.u32 %s134, 1
        %s270 = scalar_lea.sflag [#allocation6], %s269
        %s271 = sand.u32 %s134, 1
        %s272 = smul.addr %s271, 16
        %s273 = scalar_lea.vmem [#allocation9], %s272
        %p274 = scmp.lt.s32.totalorder %s28, 0
        %s275 = scalar_select %p274, %s28, 0
        %s276 = smul.addr %s275, 10
        %s277 = smul.addr %s276, 4
        %s278 = scalar_lea.vmem %s0, %s277
        %s279 = smul.u32 2, %s30
        %s280 = smul.u32 2, %s30
        %p281 = scmp.eq.s32.totalorder %s29, 0
        %p282 = scmp.eq.s32.totalorder %s30, 0
        %p283 = pnand %p281, %p282
        %p284 = pneg %p283
        // Predicated region
        $region41: #{test_model_forward.1} parent=31 // pred_check
          _
        $region42: #{test_model_forward.1} parent=31 // pred_check_branch
          %286 = sbr.rel (%p283) target = $region44
        $region43: #{test_model_forward.1} parent=31 // pred_region
          %v287 = vld [vmem:[%s278] sm:$0xff]
          %v288 = vld [vmem:[%s278 + $0x8] sm:$0xff]
          %v289 = vld [vmem:[%s278 + $0x10] sm:$0xff]
          %v290 = vld [vmem:[%s278 + $0x18] sm:$0xff]
          %v291 = vld [vmem:[%s278 + $0x20] sm:$0xff]
          %292 = vst [vmem:[#allocation2] sm:$0xff] %v287
          %293 = vst [vmem:[#allocation2 + $0x8] sm:$0xff] %v288
          %294 = vst [vmem:[#allocation2 + $0x10] sm:$0xff] %v289
          %295 = vst [vmem:[#allocation2 + $0x18] sm:$0xff] %v290
          %296 = vst [vmem:[#allocation2 + $0x20] sm:$0xff] %v291
        $region44: #{test_model_forward.1} parent=31 // pred_fallthru
          _
        %p297 = scmp.gt.s32.totalorder %s29, 0
        %p298 = pnand %p297, %p282
        %p299 = pneg %p298
        // Predicated region
        $region45: #{test_model_forward.1} parent=31 // pred_check
          _
        $region46: #{test_model_forward.1} parent=31 // pred_check_branch
          %301 = sbr.rel (%p298) target = $region48
        $region47: #{test_model_forward.1} parent=31 // pred_region
          %v302 = vld [vmem:[#allocation3] sm:$0xff]
          %v303 = vld [vmem:[#allocation3 + $0x8] sm:$0xff]
          %v304 = vld [vmem:[#allocation3 + $0x10] sm:$0xff]
          %v305 = vld [vmem:[#allocation3 + $0x18] sm:$0xff]
          %v306 = vld [vmem:[#allocation3 + $0x20] sm:$0xff]
          %307 = vst [vmem:[#allocation2] sm:$0xff] %v302
          %308 = vst [vmem:[#allocation2 + $0x8] sm:$0xff] %v303
          %309 = vst [vmem:[#allocation2 + $0x10] sm:$0xff] %v304
          %310 = vst [vmem:[#allocation2 + $0x18] sm:$0xff] %v305
          %311 = vst [vmem:[#allocation2 + $0x20] sm:$0xff] %v306
        $region48: #{test_model_forward.1} parent=31 // pred_fallthru
          _
        %v312 = vld [vmem:[#allocation2] sm:$0xff]
        %v313 = vld [vmem:[#allocation2 + $0x8] sm:$0xff]
        %v314 = vld [vmem:[#allocation2 + $0x10] sm:$0xff]
        %v315 = vld [vmem:[#allocation2 + $0x18] sm:$0xff]
        %v316 = vld [vmem:[#allocation2 + $0x20] sm:$0xff]
        %v317 = vld [vmem:[%s230] sm:$0xff]
        %v318 = vld [vmem:[%s230 + $0x8] sm:$0xff]
        %v319 = vld [vmem:[%s230 + $0x10] sm:$0xff]
        %v320 = vld [vmem:[%s230 + $0x18] sm:$0xff]
        %v321 = vld [vmem:[%s230 + $0x20] sm:$0xff]
        %v322 = vld [vmem:[%s230 + $0x28] sm:$0xff]
        %v323 = vld [vmem:[%s230 + $0x30] sm:$0xff]
        %v324 = vld [vmem:[%s230 + $0x38] sm:$0xff]
        %v325 = vld [vmem:[%s230 + $0x40] sm:$0xff]
        %v326 = vld [vmem:[%s230 + $0x48] sm:$0xff]
        %v327 = vld [vmem:[%s230 + $0x50] sm:$0xff]
        %v328 = vld [vmem:[%s230 + $0x58] sm:$0xff]
        %v329 = vld [vmem:[%s230 + $0x60] sm:$0xff]
        %v330 = vld [vmem:[%s230 + $0x68] sm:$0xff]
        %v331 = vld [vmem:[%s230 + $0x70] sm:$0xff]
        %v332 = vld [vmem:[%s230 + $0x78] sm:$0xff]
        %v333 = vld [vmem:[%s230 + $0x80] sm:$0xff]
        %v334 = vld [vmem:[%s230 + $0x88] sm:$0xff]
        %v335 = vld [vmem:[%s230 + $0x90] sm:$0xff]
        %v336 = vld [vmem:[%s230 + $0x98] sm:$0xff]
        %v337 = vld [vmem:[%s230 + $0xa0] sm:$0xff]
        %v338 = vld [vmem:[%s230 + $0xa8] sm:$0xff]
        %v339 = vld [vmem:[%s230 + $0xb0] sm:$0xff]
        %v340 = vld [vmem:[%s230 + $0xb8] sm:$0xff]
        %v341 = vld [vmem:[%s230 + $0xc0] sm:$0xff]
        %v342 = vld [vmem:[%s230 + $0xc8] sm:$0xff]
        %v343 = vld [vmem:[%s230 + $0xd0] sm:$0xff]
        %v344 = vld [vmem:[%s230 + $0xd8] sm:$0xff]
        %v345 = vld [vmem:[%s230 + $0xe0] sm:$0xff]
        %v346 = vld [vmem:[%s230 + $0xe8] sm:$0xff]
        %v347 = vld [vmem:[%s230 + $0xf0] sm:$0xff]
        %v348 = vld [vmem:[%s230 + $0xf8] sm:$0xff]
        %v349 = vld [vmem:[%s230 + $0x100] sm:$0xff]
        %v350 = vld [vmem:[%s230 + $0x108] sm:$0xff]
        %v351 = vld [vmem:[%s230 + $0x110] sm:$0xff]
        %v352 = vld [vmem:[%s230 + $0x118] sm:$0xff]
        %v353 = vld [vmem:[%s230 + $0x120] sm:$0xff]
        %v354 = vld [vmem:[%s230 + $0x128] sm:$0xff]
        %v355 = vld [vmem:[%s230 + $0x130] sm:$0xff]
        %v356 = vld [vmem:[%s230 + $0x138] sm:$0xff]
        %v357 = vld [vmem:[%s230 + $0x140] sm:$0xff]
        %v358 = vld [vmem:[%s230 + $0x148] sm:$0xff]
        %v359 = vld [vmem:[%s230 + $0x150] sm:$0xff]
        %v360 = vld [vmem:[%s230 + $0x158] sm:$0xff]
        %v361 = vld [vmem:[%s230 + $0x160] sm:$0xff]
        %v362 = vld [vmem:[%s230 + $0x168] sm:$0xff]
        %v363 = vld [vmem:[%s230 + $0x170] sm:$0xff]
        %v364 = vld [vmem:[%s230 + $0x178] sm:$0xff]
        %v365 = vld [vmem:[%s230 + $0x180] sm:$0xff]
        %v366 = vld [vmem:[%s230 + $0x188] sm:$0xff]
        %v367 = vld [vmem:[%s230 + $0x190] sm:$0xff]
        %v368 = vld [vmem:[%s230 + $0x198] sm:$0xff]
        %v369 = vld [vmem:[%s230 + $0x1a0] sm:$0xff]
        %v370 = vld [vmem:[%s230 + $0x1a8] sm:$0xff]
        %v371 = vld [vmem:[%s230 + $0x1b0] sm:$0xff]
        %v372 = vld [vmem:[%s230 + $0x1b8] sm:$0xff]
        %v373 = vld [vmem:[%s230 + $0x1c0] sm:$0xff]
        %v374 = vld [vmem:[%s230 + $0x1c8] sm:$0xff]
        %v375 = vld [vmem:[%s230 + $0x1d0] sm:$0xff]
        %v376 = vld [vmem:[%s230 + $0x1d8] sm:$0xff]
        %v377 = vld [vmem:[%s230 + $0x1e0] sm:$0xff]
        %v378 = vld [vmem:[%s230 + $0x1e8] sm:$0xff]
        %v379 = vld [vmem:[%s230 + $0x1f0] sm:$0xff]
        %v380 = vld [vmem:[%s230 + $0x1f8] sm:$0xff]
        %v381 = vld [vmem:[%s230 + $0x200] sm:$0xff]
        %v382 = vld [vmem:[%s230 + $0x208] sm:$0xff]
        %v383 = vld [vmem:[%s230 + $0x210] sm:$0xff]
        %v384 = vld [vmem:[%s230 + $0x218] sm:$0xff]
        %v385 = vld [vmem:[%s230 + $0x220] sm:$0xff]
        %v386 = vld [vmem:[%s230 + $0x228] sm:$0xff]
        %v387 = vld [vmem:[%s230 + $0x230] sm:$0xff]
        %v388 = vld [vmem:[%s230 + $0x238] sm:$0xff]
        %v389 = vld [vmem:[%s230 + $0x240] sm:$0xff]
        %v390 = vld [vmem:[%s230 + $0x248] sm:$0xff]
        %v391 = vld [vmem:[%s230 + $0x250] sm:$0xff]
        %v392 = vld [vmem:[%s230 + $0x258] sm:$0xff]
        %v393 = vld [vmem:[%s230 + $0x260] sm:$0xff]
        %v394 = vld [vmem:[%s230 + $0x268] sm:$0xff]
        %v395 = vld [vmem:[%s230 + $0x270] sm:$0xff]
        %v396 = vld [vmem:[%s230 + $0x278] sm:$0xff]
        %v397 = vld [vmem:[%s230 + $0x280] sm:$0xff]
        %v398 = vld [vmem:[%s230 + $0x288] sm:$0xff]
        %v399 = vld [vmem:[%s230 + $0x290] sm:$0xff]
        %v400 = vld [vmem:[%s230 + $0x298] sm:$0xff]
        %v401 = vld [vmem:[%s230 + $0x2a0] sm:$0xff]
        %v402 = vld [vmem:[%s230 + $0x2a8] sm:$0xff]
        %v403 = vld [vmem:[%s230 + $0x2b0] sm:$0xff]
        %v404 = vld [vmem:[%s230 + $0x2b8] sm:$0xff]
        %v405 = vld [vmem:[%s230 + $0x2c0] sm:$0xff]
        %v406 = vld [vmem:[%s230 + $0x2c8] sm:$0xff]
        %v407 = vld [vmem:[%s230 + $0x2d0] sm:$0xff]
        %v408 = vld [vmem:[%s230 + $0x2d8] sm:$0xff]
        %v409 = vld [vmem:[%s230 + $0x2e0] sm:$0xff]
        %v410 = vld [vmem:[%s230 + $0x2e8] sm:$0xff]
        %v411 = vld [vmem:[%s230 + $0x2f0] sm:$0xff]
        %v412 = vld [vmem:[%s230 + $0x2f8] sm:$0xff]
        %v413 = vld [vmem:[%s230 + $0x300] sm:$0xff]
        %v414 = vld [vmem:[%s230 + $0x308] sm:$0xff]
        %v415 = vld [vmem:[%s230 + $0x310] sm:$0xff]
        %v416 = vld [vmem:[%s230 + $0x318] sm:$0xff]
        %v417 = vld [vmem:[%s230 + $0x320] sm:$0xff]
        %v418 = vld [vmem:[%s230 + $0x328] sm:$0xff]
        %v419 = vld [vmem:[%s230 + $0x330] sm:$0xff]
        %v420 = vld [vmem:[%s230 + $0x338] sm:$0xff]
        %v421 = vld [vmem:[%s230 + $0x340] sm:$0xff]
        %v422 = vld [vmem:[%s230 + $0x348] sm:$0xff]
        %v423 = vld [vmem:[%s230 + $0x350] sm:$0xff]
        %v424 = vld [vmem:[%s230 + $0x358] sm:$0xff]
        %v425 = vld [vmem:[%s230 + $0x360] sm:$0xff]
        %v426 = vld [vmem:[%s230 + $0x368] sm:$0xff]
        %v427 = vld [vmem:[%s230 + $0x370] sm:$0xff]
        %v428 = vld [vmem:[%s230 + $0x378] sm:$0xff]
        %v429 = vld [vmem:[%s230 + $0x380] sm:$0xff]
        %v430 = vld [vmem:[%s230 + $0x388] sm:$0xff]
        %v431 = vld [vmem:[%s230 + $0x390] sm:$0xff]
        %v432 = vld [vmem:[%s230 + $0x398] sm:$0xff]
        %v433 = vld [vmem:[%s230 + $0x3a0] sm:$0xff]
        %v434 = vld [vmem:[%s230 + $0x3a8] sm:$0xff]
        %v435 = vld [vmem:[%s230 + $0x3b0] sm:$0xff]
        %v436 = vld [vmem:[%s230 + $0x3b8] sm:$0xff]
        %v437 = vld [vmem:[%s230 + $0x3c0] sm:$0xff]
        %v438 = vld [vmem:[%s230 + $0x3c8] sm:$0xff]
        %v439 = vld [vmem:[%s230 + $0x3d0] sm:$0xff]
        %v440 = vld [vmem:[%s230 + $0x3d8] sm:$0xff]
        %v441 = vld [vmem:[%s230 + $0x3e0] sm:$0xff]
        %v442 = vld [vmem:[%s230 + $0x3e8] sm:$0xff]
        %v443 = vld [vmem:[%s230 + $0x3f0] sm:$0xff]
        %v444 = vld [vmem:[%s230 + $0x3f8] sm:$0xff]
        %v445 = vld [vmem:[%s230 + $0x400] sm:$0xff]
        %v446 = vld [vmem:[%s230 + $0x408] sm:$0xff]
        %v447 = vld [vmem:[%s230 + $0x410] sm:$0xff]
        %v448 = vld [vmem:[%s230 + $0x418] sm:$0xff]
        %v449 = vld [vmem:[%s230 + $0x420] sm:$0xff]
        %v450 = vld [vmem:[%s230 + $0x428] sm:$0xff]
        %v451 = vld [vmem:[%s230 + $0x430] sm:$0xff]
        %v452 = vld [vmem:[%s230 + $0x438] sm:$0xff]
        %v453 = vld [vmem:[%s230 + $0x440] sm:$0xff]
        %v454 = vld [vmem:[%s230 + $0x448] sm:$0xff]
        %v455 = vld [vmem:[%s230 + $0x450] sm:$0xff]
        %v456 = vld [vmem:[%s230 + $0x458] sm:$0xff]
        %v457 = vld [vmem:[%s230 + $0x460] sm:$0xff]
        %v458 = vld [vmem:[%s230 + $0x468] sm:$0xff]
        %v459 = vld [vmem:[%s230 + $0x470] sm:$0xff]
        %v460 = vld [vmem:[%s230 + $0x478] sm:$0xff]
        %v461 = vld [vmem:[%s230 + $0x480] sm:$0xff]
        %v462 = vld [vmem:[%s230 + $0x488] sm:$0xff]
        %v463 = vld [vmem:[%s230 + $0x490] sm:$0xff]
        %v464 = vld [vmem:[%s230 + $0x498] sm:$0xff]
        %v465 = vld [vmem:[%s230 + $0x4a0] sm:$0xff]
        %v466 = vld [vmem:[%s230 + $0x4a8] sm:$0xff]
        %v467 = vld [vmem:[%s230 + $0x4b0] sm:$0xff]
        %v468 = vld [vmem:[%s230 + $0x4b8] sm:$0xff]
        %v469 = vld [vmem:[%s230 + $0x4c0] sm:$0xff]
        %v470 = vld [vmem:[%s230 + $0x4c8] sm:$0xff]
        %v471 = vld [vmem:[%s230 + $0x4d0] sm:$0xff]
        %v472 = vld [vmem:[%s230 + $0x4d8] sm:$0xff]
        %v473 = vld [vmem:[%s230 + $0x4e0] sm:$0xff]
        %v474 = vld [vmem:[%s230 + $0x4e8] sm:$0xff]
        %v475 = vld [vmem:[%s230 + $0x4f0] sm:$0xff]
        %v476 = vld [vmem:[%s230 + $0x4f8] sm:$0xff]
        %v477 = vld [vmem:[%s240] sm:$0x3]
        %v479 = vperm.slane %v477, 0
        %v480 = vperm.slane %v477, 1
        %v488 = vunpack.c.l.b16 %v312
        %v489 = vunpack.c.h.b16 %v312
        %v490 = vunpack.c.l.b16 %v313
        %v491 = vunpack.c.h.b16 %v313
        %v492 = vunpack.c.l.b16 %v314
        %v493 = vunpack.c.h.b16 %v314
        %v494 = vunpack.c.l.b16 %v315
        %v495 = vunpack.c.h.b16 %v315
        %v496 = vunpack.c.l.b16 %v316
        %v497 = vunpack.c.h.b16 %v316
        %v498 = vpack.c.b16 %v488, %v488
        %v499 = vpack.c.b16 %v489, %v489
        %v500 = vpack.c.b16 %v490, %v490
        %v501 = vpack.c.b16 %v491, %v491
        %v502 = vpack.c.b16 %v492, %v492
        %v503 = vpack.c.b16 %v493, %v493
        %v504 = vpack.c.b16 %v494, %v494
        %v505 = vpack.c.b16 %v495, %v495
        %v506 = vpack.c.b16 %v496, %v496
        %v507 = vpack.c.b16 %v497, %v497
        %v678 = vunpack.c.l.b16 %v317
        %v679 = vunpack.c.h.b16 %v317
        %v680 = vunpack.c.l.b16 %v318
        %v681 = vunpack.c.h.b16 %v318
        %v682 = vunpack.c.l.b16 %v319
        %v683 = vunpack.c.h.b16 %v319
        %v684 = vunpack.c.l.b16 %v320
        %v685 = vunpack.c.h.b16 %v320
        %v686 = vunpack.c.l.b16 %v321
        %v687 = vunpack.c.h.b16 %v321
        %v688 = vunpack.c.l.b16 %v322
        %v689 = vunpack.c.h.b16 %v322
        %v690 = vunpack.c.l.b16 %v323
        %v691 = vunpack.c.h.b16 %v323
        %v692 = vunpack.c.l.b16 %v324
        %v693 = vunpack.c.h.b16 %v324
        %v694 = vunpack.c.l.b16 %v325
        %v695 = vunpack.c.h.b16 %v325
        %v696 = vunpack.c.l.b16 %v326
        %v697 = vunpack.c.h.b16 %v326
        %v698 = vunpack.c.l.b16 %v327
        %v699 = vunpack.c.h.b16 %v327
        %v700 = vunpack.c.l.b16 %v328
        %v701 = vunpack.c.h.b16 %v328
        %v702 = vunpack.c.l.b16 %v329
        %v703 = vunpack.c.h.b16 %v329
        %v704 = vunpack.c.l.b16 %v330
        %v705 = vunpack.c.h.b16 %v330
        %v706 = vunpack.c.l.b16 %v331
        %v707 = vunpack.c.h.b16 %v331
        %v708 = vunpack.c.l.b16 %v332
        %v709 = vunpack.c.h.b16 %v332
        %v710 = vunpack.c.l.b16 %v333
        %v711 = vunpack.c.h.b16 %v333
        %v712 = vunpack.c.l.b16 %v334
        %v713 = vunpack.c.h.b16 %v334
        %v714 = vunpack.c.l.b16 %v335
        %v715 = vunpack.c.h.b16 %v335
        %v716 = vunpack.c.l.b16 %v336
        %v717 = vunpack.c.h.b16 %v336
        %v718 = vunpack.c.l.b16 %v337
        %v719 = vunpack.c.h.b16 %v337
        %v720 = vunpack.c.l.b16 %v338
        %v721 = vunpack.c.h.b16 %v338
        %v722 = vunpack.c.l.b16 %v339
        %v723 = vunpack.c.h.b16 %v339
        %v724 = vunpack.c.l.b16 %v340
        %v725 = vunpack.c.h.b16 %v340
        %v726 = vunpack.c.l.b16 %v341
        %v727 = vunpack.c.h.b16 %v341
        %v728 = vunpack.c.l.b16 %v342
        %v729 = vunpack.c.h.b16 %v342
        %v730 = vunpack.c.l.b16 %v343
        %v731 = vunpack.c.h.b16 %v343
        %v732 = vunpack.c.l.b16 %v344
        %v733 = vunpack.c.h.b16 %v344
        %v734 = vunpack.c.l.b16 %v345
        %v735 = vunpack.c.h.b16 %v345
        %v736 = vunpack.c.l.b16 %v346
        %v737 = vunpack.c.h.b16 %v346
        %v738 = vunpack.c.l.b16 %v347
        %v739 = vunpack.c.h.b16 %v347
        %v740 = vunpack.c.l.b16 %v348
        %v741 = vunpack.c.h.b16 %v348
        %v742 = vunpack.c.l.b16 %v349
        %v743 = vunpack.c.h.b16 %v349
        %v744 = vunpack.c.l.b16 %v350
        %v745 = vunpack.c.h.b16 %v350
        %v746 = vunpack.c.l.b16 %v351
        %v747 = vunpack.c.h.b16 %v351
        %v748 = vunpack.c.l.b16 %v352
        %v749 = vunpack.c.h.b16 %v352
        %v750 = vunpack.c.l.b16 %v353
        %v751 = vunpack.c.h.b16 %v353
        %v752 = vunpack.c.l.b16 %v354
        %v753 = vunpack.c.h.b16 %v354
        %v754 = vunpack.c.l.b16 %v355
        %v755 = vunpack.c.h.b16 %v355
        %v756 = vunpack.c.l.b16 %v356
        %v757 = vunpack.c.h.b16 %v356
        %v758 = vunpack.c.l.b16 %v357
        %v759 = vunpack.c.h.b16 %v357
        %v760 = vunpack.c.l.b16 %v358
        %v761 = vunpack.c.h.b16 %v358
        %v762 = vunpack.c.l.b16 %v359
        %v763 = vunpack.c.h.b16 %v359
        %v764 = vunpack.c.l.b16 %v360
        %v765 = vunpack.c.h.b16 %v360
        %v766 = vunpack.c.l.b16 %v361
        %v767 = vunpack.c.h.b16 %v361
        %v768 = vunpack.c.l.b16 %v362
        %v769 = vunpack.c.h.b16 %v362
        %v770 = vunpack.c.l.b16 %v363
        %v771 = vunpack.c.h.b16 %v363
        %v772 = vunpack.c.l.b16 %v364
        %v773 = vunpack.c.h.b16 %v364
        %v774 = vunpack.c.l.b16 %v365
        %v775 = vunpack.c.h.b16 %v365
        %v776 = vunpack.c.l.b16 %v366
        %v777 = vunpack.c.h.b16 %v366
        %v778 = vunpack.c.l.b16 %v367
        %v779 = vunpack.c.h.b16 %v367
        %v780 = vunpack.c.l.b16 %v368
        %v781 = vunpack.c.h.b16 %v368
        %v782 = vunpack.c.l.b16 %v369
        %v783 = vunpack.c.h.b16 %v369
        %v784 = vunpack.c.l.b16 %v370
        %v785 = vunpack.c.h.b16 %v370
        %v786 = vunpack.c.l.b16 %v371
        %v787 = vunpack.c.h.b16 %v371
        %v788 = vunpack.c.l.b16 %v372
        %v789 = vunpack.c.h.b16 %v372
        %v790 = vunpack.c.l.b16 %v373
        %v791 = vunpack.c.h.b16 %v373
        %v792 = vunpack.c.l.b16 %v374
        %v793 = vunpack.c.h.b16 %v374
        %v794 = vunpack.c.l.b16 %v375
        %v795 = vunpack.c.h.b16 %v375
        %v796 = vunpack.c.l.b16 %v376
        %v797 = vunpack.c.h.b16 %v376
        %v798 = vunpack.c.l.b16 %v377
        %v799 = vunpack.c.h.b16 %v377
        %v800 = vunpack.c.l.b16 %v378
        %v801 = vunpack.c.h.b16 %v378
        %v802 = vunpack.c.l.b16 %v379
        %v803 = vunpack.c.h.b16 %v379
        %v804 = vunpack.c.l.b16 %v380
        %v805 = vunpack.c.h.b16 %v380
        %v806 = vunpack.c.l.b16 %v381
        %v807 = vunpack.c.h.b16 %v381
        %v808 = vunpack.c.l.b16 %v382
        %v809 = vunpack.c.h.b16 %v382
        %v810 = vunpack.c.l.b16 %v383
        %v811 = vunpack.c.h.b16 %v383
        %v812 = vunpack.c.l.b16 %v384
        %v813 = vunpack.c.h.b16 %v384
        %v814 = vunpack.c.l.b16 %v385
        %v815 = vunpack.c.h.b16 %v385
        %v816 = vunpack.c.l.b16 %v386
        %v817 = vunpack.c.h.b16 %v386
        %v818 = vunpack.c.l.b16 %v387
        %v819 = vunpack.c.h.b16 %v387
        %v820 = vunpack.c.l.b16 %v388
        %v821 = vunpack.c.h.b16 %v388
        %v822 = vunpack.c.l.b16 %v389
        %v823 = vunpack.c.h.b16 %v389
        %v824 = vunpack.c.l.b16 %v390
        %v825 = vunpack.c.h.b16 %v390
        %v826 = vunpack.c.l.b16 %v391
        %v827 = vunpack.c.h.b16 %v391
        %v828 = vunpack.c.l.b16 %v392
        %v829 = vunpack.c.h.b16 %v392
        %v830 = vunpack.c.l.b16 %v393
        %v831 = vunpack.c.h.b16 %v393
        %v832 = vunpack.c.l.b16 %v394
        %v833 = vunpack.c.h.b16 %v394
        %v834 = vunpack.c.l.b16 %v395
        %v835 = vunpack.c.h.b16 %v395
        %v836 = vunpack.c.l.b16 %v396
        %v837 = vunpack.c.h.b16 %v396
        %v838 = vunpack.c.l.b16 %v397
        %v839 = vunpack.c.h.b16 %v397
        %v840 = vunpack.c.l.b16 %v398
        %v841 = vunpack.c.h.b16 %v398
        %v842 = vunpack.c.l.b16 %v399
        %v843 = vunpack.c.h.b16 %v399
        %v844 = vunpack.c.l.b16 %v400
        %v845 = vunpack.c.h.b16 %v400
        %v846 = vunpack.c.l.b16 %v401
        %v847 = vunpack.c.h.b16 %v401
        %v848 = vunpack.c.l.b16 %v402
        %v849 = vunpack.c.h.b16 %v402
        %v850 = vunpack.c.l.b16 %v403
        %v851 = vunpack.c.h.b16 %v403
        %v852 = vunpack.c.l.b16 %v404
        %v853 = vunpack.c.h.b16 %v404
        %v854 = vunpack.c.l.b16 %v405
        %v855 = vunpack.c.h.b16 %v405
        %v856 = vunpack.c.l.b16 %v406
        %v857 = vunpack.c.h.b16 %v406
        %v858 = vunpack.c.l.b16 %v407
        %v859 = vunpack.c.h.b16 %v407
        %v860 = vunpack.c.l.b16 %v408
        %v861 = vunpack.c.h.b16 %v408
        %v862 = vunpack.c.l.b16 %v409
        %v863 = vunpack.c.h.b16 %v409
        %v864 = vunpack.c.l.b16 %v410
        %v865 = vunpack.c.h.b16 %v410
        %v866 = vunpack.c.l.b16 %v411
        %v867 = vunpack.c.h.b16 %v411
        %v868 = vunpack.c.l.b16 %v412
        %v869 = vunpack.c.h.b16 %v412
        %v870 = vunpack.c.l.b16 %v413
        %v871 = vunpack.c.h.b16 %v413
        %v872 = vunpack.c.l.b16 %v414
        %v873 = vunpack.c.h.b16 %v414
        %v874 = vunpack.c.l.b16 %v415
        %v875 = vunpack.c.h.b16 %v415
        %v876 = vunpack.c.l.b16 %v416
        %v877 = vunpack.c.h.b16 %v416
        %v878 = vunpack.c.l.b16 %v417
        %v879 = vunpack.c.h.b16 %v417
        %v880 = vunpack.c.l.b16 %v418
        %v881 = vunpack.c.h.b16 %v418
        %v882 = vunpack.c.l.b16 %v419
        %v883 = vunpack.c.h.b16 %v419
        %v884 = vunpack.c.l.b16 %v420
        %v885 = vunpack.c.h.b16 %v420
        %v886 = vunpack.c.l.b16 %v421
        %v887 = vunpack.c.h.b16 %v421
        %v888 = vunpack.c.l.b16 %v422
        %v889 = vunpack.c.h.b16 %v422
        %v890 = vunpack.c.l.b16 %v423
        %v891 = vunpack.c.h.b16 %v423
        %v892 = vunpack.c.l.b16 %v424
        %v893 = vunpack.c.h.b16 %v424
        %v894 = vunpack.c.l.b16 %v425
        %v895 = vunpack.c.h.b16 %v425
        %v896 = vunpack.c.l.b16 %v426
        %v897 = vunpack.c.h.b16 %v426
        %v898 = vunpack.c.l.b16 %v427
        %v899 = vunpack.c.h.b16 %v427
        %v900 = vunpack.c.l.b16 %v428
        %v901 = vunpack.c.h.b16 %v428
        %v902 = vunpack.c.l.b16 %v429
        %v903 = vunpack.c.h.b16 %v429
        %v904 = vunpack.c.l.b16 %v430
        %v905 = vunpack.c.h.b16 %v430
        %v906 = vunpack.c.l.b16 %v431
        %v907 = vunpack.c.h.b16 %v431
        %v908 = vunpack.c.l.b16 %v432
        %v909 = vunpack.c.h.b16 %v432
        %v910 = vunpack.c.l.b16 %v433
        %v911 = vunpack.c.h.b16 %v433
        %v912 = vunpack.c.l.b16 %v434
        %v913 = vunpack.c.h.b16 %v434
        %v914 = vunpack.c.l.b16 %v435
        %v915 = vunpack.c.h.b16 %v435
        %v916 = vunpack.c.l.b16 %v436
        %v917 = vunpack.c.h.b16 %v436
        %v918 = vunpack.c.l.b16 %v437
        %v919 = vunpack.c.h.b16 %v437
        %v920 = vunpack.c.l.b16 %v438
        %v921 = vunpack.c.h.b16 %v438
        %v922 = vunpack.c.l.b16 %v439
        %v923 = vunpack.c.h.b16 %v439
        %v924 = vunpack.c.l.b16 %v440
        %v925 = vunpack.c.h.b16 %v440
        %v926 = vunpack.c.l.b16 %v441
        %v927 = vunpack.c.h.b16 %v441
        %v928 = vunpack.c.l.b16 %v442
        %v929 = vunpack.c.h.b16 %v442
        %v930 = vunpack.c.l.b16 %v443
        %v931 = vunpack.c.h.b16 %v443
        %v932 = vunpack.c.l.b16 %v444
        %v933 = vunpack.c.h.b16 %v444
        %v934 = vunpack.c.l.b16 %v445
        %v935 = vunpack.c.h.b16 %v445
        %v936 = vunpack.c.l.b16 %v446
        %v937 = vunpack.c.h.b16 %v446
        %v938 = vunpack.c.l.b16 %v447
        %v939 = vunpack.c.h.b16 %v447
        %v940 = vunpack.c.l.b16 %v448
        %v941 = vunpack.c.h.b16 %v448
        %v942 = vunpack.c.l.b16 %v449
        %v943 = vunpack.c.h.b16 %v449
        %v944 = vunpack.c.l.b16 %v450
        %v945 = vunpack.c.h.b16 %v450
        %v946 = vunpack.c.l.b16 %v451
        %v947 = vunpack.c.h.b16 %v451
        %v948 = vunpack.c.l.b16 %v452
        %v949 = vunpack.c.h.b16 %v452
        %v950 = vunpack.c.l.b16 %v453
        %v951 = vunpack.c.h.b16 %v453
        %v952 = vunpack.c.l.b16 %v454
        %v953 = vunpack.c.h.b16 %v454
        %v954 = vunpack.c.l.b16 %v455
        %v955 = vunpack.c.h.b16 %v455
        %v956 = vunpack.c.l.b16 %v456
        %v957 = vunpack.c.h.b16 %v456
        %v958 = vunpack.c.l.b16 %v457
        %v959 = vunpack.c.h.b16 %v457
        %v960 = vunpack.c.l.b16 %v458
        %v961 = vunpack.c.h.b16 %v458
        %v962 = vunpack.c.l.b16 %v459
        %v963 = vunpack.c.h.b16 %v459
        %v964 = vunpack.c.l.b16 %v460
        %v965 = vunpack.c.h.b16 %v460
        %v966 = vunpack.c.l.b16 %v461
        %v967 = vunpack.c.h.b16 %v461
        %v968 = vunpack.c.l.b16 %v462
        %v969 = vunpack.c.h.b16 %v462
        %v970 = vunpack.c.l.b16 %v463
        %v971 = vunpack.c.h.b16 %v463
        %v972 = vunpack.c.l.b16 %v464
        %v973 = vunpack.c.h.b16 %v464
        %v974 = vunpack.c.l.b16 %v465
        %v975 = vunpack.c.h.b16 %v465
        %v976 = vunpack.c.l.b16 %v466
        %v977 = vunpack.c.h.b16 %v466
        %v978 = vunpack.c.l.b16 %v467
        %v979 = vunpack.c.h.b16 %v467
        %v980 = vunpack.c.l.b16 %v468
        %v981 = vunpack.c.h.b16 %v468
        %v982 = vunpack.c.l.b16 %v469
        %v983 = vunpack.c.h.b16 %v469
        %v984 = vunpack.c.l.b16 %v470
        %v985 = vunpack.c.h.b16 %v470
        %v986 = vunpack.c.l.b16 %v471
        %v987 = vunpack.c.h.b16 %v471
        %v988 = vunpack.c.l.b16 %v472
        %v989 = vunpack.c.h.b16 %v472
        %v990 = vunpack.c.l.b16 %v473
        %v991 = vunpack.c.h.b16 %v473
        %v992 = vunpack.c.l.b16 %v474
        %v993 = vunpack.c.h.b16 %v474
        %v994 = vunpack.c.l.b16 %v475
        %v995 = vunpack.c.h.b16 %v475
        %v996 = vunpack.c.l.b16 %v476
        %v997 = vunpack.c.h.b16 %v476
        %v998 = vpack.c.b16 %v680, %v678
        %v999 = vpack.c.b16 %v681, %v679
        %v1000 = vpack.c.b16 %v684, %v682
        %v1001 = vpack.c.b16 %v685, %v683
        %v1002 = vpack.c.b16 %v688, %v686
        %v1003 = vpack.c.b16 %v689, %v687
        %v1004 = vpack.c.b16 %v692, %v690
        %v1005 = vpack.c.b16 %v693, %v691
        %v1006 = vpack.c.b16 %v696, %v694
        %v1007 = vpack.c.b16 %v697, %v695
        %v1008 = vpack.c.b16 %v700, %v698
        %v1009 = vpack.c.b16 %v701, %v699
        %v1010 = vpack.c.b16 %v704, %v702
        %v1011 = vpack.c.b16 %v705, %v703
        %v1012 = vpack.c.b16 %v708, %v706
        %v1013 = vpack.c.b16 %v709, %v707
        %v1014 = vpack.c.b16 %v712, %v710
        %v1015 = vpack.c.b16 %v713, %v711
        %v1016 = vpack.c.b16 %v716, %v714
        %v1017 = vpack.c.b16 %v717, %v715
        %v1018 = vpack.c.b16 %v720, %v718
        %v1019 = vpack.c.b16 %v721, %v719
        %v1020 = vpack.c.b16 %v724, %v722
        %v1021 = vpack.c.b16 %v725, %v723
        %v1022 = vpack.c.b16 %v728, %v726
        %v1023 = vpack.c.b16 %v729, %v727
        %v1024 = vpack.c.b16 %v732, %v730
        %v1025 = vpack.c.b16 %v733, %v731
        %v1026 = vpack.c.b16 %v736, %v734
        %v1027 = vpack.c.b16 %v737, %v735
        %v1028 = vpack.c.b16 %v740, %v738
        %v1029 = vpack.c.b16 %v741, %v739
        %v1030 = vpack.c.b16 %v744, %v742
        %v1031 = vpack.c.b16 %v745, %v743
        %v1032 = vpack.c.b16 %v748, %v746
        %v1033 = vpack.c.b16 %v749, %v747
        %v1034 = vpack.c.b16 %v752, %v750
        %v1035 = vpack.c.b16 %v753, %v751
        %v1036 = vpack.c.b16 %v756, %v754
        %v1037 = vpack.c.b16 %v757, %v755
        %v1038 = vpack.c.b16 %v760, %v758
        %v1039 = vpack.c.b16 %v761, %v759
        %v1040 = vpack.c.b16 %v764, %v762
        %v1041 = vpack.c.b16 %v765, %v763
        %v1042 = vpack.c.b16 %v768, %v766
        %v1043 = vpack.c.b16 %v769, %v767
        %v1044 = vpack.c.b16 %v772, %v770
        %v1045 = vpack.c.b16 %v773, %v771
        %v1046 = vpack.c.b16 %v776, %v774
        %v1047 = vpack.c.b16 %v777, %v775
        %v1048 = vpack.c.b16 %v780, %v778
        %v1049 = vpack.c.b16 %v781, %v779
        %v1050 = vpack.c.b16 %v784, %v782
        %v1051 = vpack.c.b16 %v785, %v783
        %v1052 = vpack.c.b16 %v788, %v786
        %v1053 = vpack.c.b16 %v789, %v787
        %v1054 = vpack.c.b16 %v792, %v790
        %v1055 = vpack.c.b16 %v793, %v791
        %v1056 = vpack.c.b16 %v796, %v794
        %v1057 = vpack.c.b16 %v797, %v795
        %v1058 = vpack.c.b16 %v800, %v798
        %v1059 = vpack.c.b16 %v801, %v799
        %v1060 = vpack.c.b16 %v804, %v802
        %v1061 = vpack.c.b16 %v805, %v803
        %v1062 = vpack.c.b16 %v808, %v806
        %v1063 = vpack.c.b16 %v809, %v807
        %v1064 = vpack.c.b16 %v812, %v810
        %v1065 = vpack.c.b16 %v813, %v811
        %v1066 = vpack.c.b16 %v816, %v814
        %v1067 = vpack.c.b16 %v817, %v815
        %v1068 = vpack.c.b16 %v820, %v818
        %v1069 = vpack.c.b16 %v821, %v819
        %v1070 = vpack.c.b16 %v824, %v822
        %v1071 = vpack.c.b16 %v825, %v823
        %v1072 = vpack.c.b16 %v828, %v826
        %v1073 = vpack.c.b16 %v829, %v827
        %v1074 = vpack.c.b16 %v832, %v830
        %v1075 = vpack.c.b16 %v833, %v831
        %v1076 = vpack.c.b16 %v836, %v834
        %v1077 = vpack.c.b16 %v837, %v835
        %v1078 = vpack.c.b16 %v840, %v838
        %v1079 = vpack.c.b16 %v841, %v839
        %v1080 = vpack.c.b16 %v844, %v842
        %v1081 = vpack.c.b16 %v845, %v843
        %v1082 = vpack.c.b16 %v848, %v846
        %v1083 = vpack.c.b16 %v849, %v847
        %v1084 = vpack.c.b16 %v852, %v850
        %v1085 = vpack.c.b16 %v853, %v851
        %v1086 = vpack.c.b16 %v856, %v854
        %v1087 = vpack.c.b16 %v857, %v855
        %v1088 = vpack.c.b16 %v860, %v858
        %v1089 = vpack.c.b16 %v861, %v859
        %v1090 = vpack.c.b16 %v864, %v862
        %v1091 = vpack.c.b16 %v865, %v863
        %v1092 = vpack.c.b16 %v868, %v866
        %v1093 = vpack.c.b16 %v869, %v867
        %v1094 = vpack.c.b16 %v872, %v870
        %v1095 = vpack.c.b16 %v873, %v871
        %v1096 = vpack.c.b16 %v876, %v874
        %v1097 = vpack.c.b16 %v877, %v875
        %v1098 = vpack.c.b16 %v880, %v878
        %v1099 = vpack.c.b16 %v881, %v879
        %v1100 = vpack.c.b16 %v884, %v882
        %v1101 = vpack.c.b16 %v885, %v883
        %v1102 = vpack.c.b16 %v888, %v886
        %v1103 = vpack.c.b16 %v889, %v887
        %v1104 = vpack.c.b16 %v892, %v890
        %v1105 = vpack.c.b16 %v893, %v891
        %v1106 = vpack.c.b16 %v896, %v894
        %v1107 = vpack.c.b16 %v897, %v895
        %v1108 = vpack.c.b16 %v900, %v898
        %v1109 = vpack.c.b16 %v901, %v899
        %v1110 = vpack.c.b16 %v904, %v902
        %v1111 = vpack.c.b16 %v905, %v903
        %v1112 = vpack.c.b16 %v908, %v906
        %v1113 = vpack.c.b16 %v909, %v907
        %v1114 = vpack.c.b16 %v912, %v910
        %v1115 = vpack.c.b16 %v913, %v911
        %v1116 = vpack.c.b16 %v916, %v914
        %v1117 = vpack.c.b16 %v917, %v915
        %v1118 = vpack.c.b16 %v920, %v918
        %v1119 = vpack.c.b16 %v921, %v919
        %v1120 = vpack.c.b16 %v924, %v922
        %v1121 = vpack.c.b16 %v925, %v923
        %v1122 = vpack.c.b16 %v928, %v926
        %v1123 = vpack.c.b16 %v929, %v927
        %v1124 = vpack.c.b16 %v932, %v930
        %v1125 = vpack.c.b16 %v933, %v931
        %v1126 = vpack.c.b16 %v936, %v934
        %v1127 = vpack.c.b16 %v937, %v935
        %v1128 = vpack.c.b16 %v940, %v938
        %v1129 = vpack.c.b16 %v941, %v939
        %v1130 = vpack.c.b16 %v944, %v942
        %v1131 = vpack.c.b16 %v945, %v943
        %v1132 = vpack.c.b16 %v948, %v946
        %v1133 = vpack.c.b16 %v949, %v947
        %v1134 = vpack.c.b16 %v952, %v950
        %v1135 = vpack.c.b16 %v953, %v951
        %v1136 = vpack.c.b16 %v956, %v954
        %v1137 = vpack.c.b16 %v957, %v955
        %v1138 = vpack.c.b16 %v960, %v958
        %v1139 = vpack.c.b16 %v961, %v959
        %v1140 = vpack.c.b16 %v964, %v962
        %v1141 = vpack.c.b16 %v965, %v963
        %v1142 = vpack.c.b16 %v968, %v966
        %v1143 = vpack.c.b16 %v969, %v967
        %v1144 = vpack.c.b16 %v972, %v970
        %v1145 = vpack.c.b16 %v973, %v971
        %v1146 = vpack.c.b16 %v976, %v974
        %v1147 = vpack.c.b16 %v977, %v975
        %v1148 = vpack.c.b16 %v980, %v978
        %v1149 = vpack.c.b16 %v981, %v979
        %v1150 = vpack.c.b16 %v984, %v982
        %v1151 = vpack.c.b16 %v985, %v983
        %v1152 = vpack.c.b16 %v988, %v986
        %v1153 = vpack.c.b16 %v989, %v987
        %v1154 = vpack.c.b16 %v992, %v990
        %v1155 = vpack.c.b16 %v993, %v991
        %v1156 = vpack.c.b16 %v996, %v994
        %v1157 = vpack.c.b16 %v997, %v995
        %1318 = vmatpush.bf16.msra.mxu0 %v1012
        %1319 = vmatpush.bf16.msra.mxu0 %v1010
        %1320 = vmatpush.bf16.msra.mxu0 %v1008
        %1321 = vmatpush.bf16.msra.mxu0 %v1006
        %1322 = vmatpush.bf16.msra.mxu0 %v1004
        %1323 = vmatpush.bf16.msra.mxu0 %v1002
        %1324 = vmatpush.bf16.msra.mxu0 %v1000
        %1325 = vmatpush.bf16.msra.mxu0 %v998
        %1326 = vmatmul.bf16.gmra.mxu0 %v498
        %v1327 = vpop.f32.mrf.mxu0
        %v1328 = vadd.f32 %v479, %v1327
        %v1329 = vpop.f32.mrf.mxu0
        %1330 = vdwg.mxu0
        %1331 = vmatpush.bf16.msra.mxu0 %v1028
        %1332 = vmatpush.bf16.msra.mxu0 %v1026
        %1333 = vmatpush.bf16.msra.mxu0 %v1024
        %1334 = vmatpush.bf16.msra.mxu0 %v1022
        %1335 = vmatpush.bf16.msra.mxu0 %v1020
        %1336 = vmatpush.bf16.msra.mxu0 %v1018
        %1337 = vmatpush.bf16.msra.mxu0 %v1016
        %1338 = vmatpush.bf16.msra.mxu0 %v1014
        %1339 = vmatmul.bf16.gmra.mxu0 %v499
        %v1340 = vpop.f32.mrf.mxu0
        %v1341 = vadd.f32 %v1328, %v1340
        %v1342 = vpop.f32.mrf.mxu0
        %1343 = vdwg.mxu0
        %1344 = vmatpush.bf16.msra.mxu0 %v1044
        %1345 = vmatpush.bf16.msra.mxu0 %v1042
        %1346 = vmatpush.bf16.msra.mxu0 %v1040
        %1347 = vmatpush.bf16.msra.mxu0 %v1038
        %1348 = vmatpush.bf16.msra.mxu0 %v1036
        %1349 = vmatpush.bf16.msra.mxu0 %v1034
        %1350 = vmatpush.bf16.msra.mxu0 %v1032
        %1351 = vmatpush.bf16.msra.mxu0 %v1030
        %1352 = vmatmul.bf16.gmra.mxu0 %v500
        %v1353 = vpop.f32.mrf.mxu0
        %v1354 = vadd.f32 %v1341, %v1353
        %v1355 = vpop.f32.mrf.mxu0
        %1356 = vdwg.mxu0
        %1357 = vmatpush.bf16.msra.mxu0 %v1060
        %1358 = vmatpush.bf16.msra.mxu0 %v1058
        %1359 = vmatpush.bf16.msra.mxu0 %v1056
        %1360 = vmatpush.bf16.msra.mxu0 %v1054
        %1361 = vmatpush.bf16.msra.mxu0 %v1052
        %1362 = vmatpush.bf16.msra.mxu0 %v1050
        %1363 = vmatpush.bf16.msra.mxu0 %v1048
        %1364 = vmatpush.bf16.msra.mxu0 %v1046
        %1365 = vmatmul.bf16.gmra.mxu0 %v501
        %v1366 = vpop.f32.mrf.mxu0
        %v1367 = vadd.f32 %v1354, %v1366
        %v1368 = vpop.f32.mrf.mxu0
        %1369 = vdwg.mxu0
        %1370 = vmatpush.bf16.msra.mxu0 %v1076
        %1371 = vmatpush.bf16.msra.mxu0 %v1074
        %1372 = vmatpush.bf16.msra.mxu0 %v1072
        %1373 = vmatpush.bf16.msra.mxu0 %v1070
        %1374 = vmatpush.bf16.msra.mxu0 %v1068
        %1375 = vmatpush.bf16.msra.mxu0 %v1066
        %1376 = vmatpush.bf16.msra.mxu0 %v1064
        %1377 = vmatpush.bf16.msra.mxu0 %v1062
        %1378 = vmatmul.bf16.gmra.mxu0 %v502
        %v1379 = vpop.f32.mrf.mxu0
        %v1380 = vadd.f32 %v1367, %v1379
        %v1381 = vpop.f32.mrf.mxu0
        %1382 = vdwg.mxu0
        %1383 = vmatpush.bf16.msra.mxu0 %v1092
        %1384 = vmatpush.bf16.msra.mxu0 %v1090
        %1385 = vmatpush.bf16.msra.mxu0 %v1088
        %1386 = vmatpush.bf16.msra.mxu0 %v1086
        %1387 = vmatpush.bf16.msra.mxu0 %v1084
        %1388 = vmatpush.bf16.msra.mxu0 %v1082
        %1389 = vmatpush.bf16.msra.mxu0 %v1080
        %1390 = vmatpush.bf16.msra.mxu0 %v1078
        %1391 = vmatmul.bf16.gmra.mxu0 %v503
        %v1392 = vpop.f32.mrf.mxu0
        %v1393 = vadd.f32 %v1380, %v1392
        %v1394 = vpop.f32.mrf.mxu0
        %1395 = vdwg.mxu0
        %1396 = vmatpush.bf16.msra.mxu0 %v1108
        %1397 = vmatpush.bf16.msra.mxu0 %v1106
        %1398 = vmatpush.bf16.msra.mxu0 %v1104
        %1399 = vmatpush.bf16.msra.mxu0 %v1102
        %1400 = vmatpush.bf16.msra.mxu0 %v1100
        %1401 = vmatpush.bf16.msra.mxu0 %v1098
        %1402 = vmatpush.bf16.msra.mxu0 %v1096
        %1403 = vmatpush.bf16.msra.mxu0 %v1094
        %1404 = vmatmul.bf16.gmra.mxu0 %v504
        %v1405 = vpop.f32.mrf.mxu0
        %v1406 = vadd.f32 %v1393, %v1405
        %v1407 = vpop.f32.mrf.mxu0
        %1408 = vdwg.mxu0
        %1409 = vmatpush.bf16.msra.mxu0 %v1124
        %1410 = vmatpush.bf16.msra.mxu0 %v1122
        %1411 = vmatpush.bf16.msra.mxu0 %v1120
        %1412 = vmatpush.bf16.msra.mxu0 %v1118
        %1413 = vmatpush.bf16.msra.mxu0 %v1116
        %1414 = vmatpush.bf16.msra.mxu0 %v1114
        %1415 = vmatpush.bf16.msra.mxu0 %v1112
        %1416 = vmatpush.bf16.msra.mxu0 %v1110
        %1417 = vmatmul.bf16.gmra.mxu0 %v505
        %v1418 = vpop.f32.mrf.mxu0
        %v1419 = vadd.f32 %v1406, %v1418
        %v1420 = vpop.f32.mrf.mxu0
        %1421 = vdwg.mxu0
        %1422 = vmatpush.bf16.msra.mxu0 %v1140
        %1423 = vmatpush.bf16.msra.mxu0 %v1138
        %1424 = vmatpush.bf16.msra.mxu0 %v1136
        %1425 = vmatpush.bf16.msra.mxu0 %v1134
        %1426 = vmatpush.bf16.msra.mxu0 %v1132
        %1427 = vmatpush.bf16.msra.mxu0 %v1130
        %1428 = vmatpush.bf16.msra.mxu0 %v1128
        %1429 = vmatpush.bf16.msra.mxu0 %v1126
        %1430 = vmatmul.bf16.gmra.mxu0 %v506
        %v1431 = vpop.f32.mrf.mxu0
        %v1432 = vadd.f32 %v1419, %v1431
        %v1433 = vpop.f32.mrf.mxu0
        %1434 = vdwg.mxu0
        %1435 = vmatpush.bf16.msra.mxu0 %v1156
        %1436 = vmatpush.bf16.msra.mxu0 %v1154
        %1437 = vmatpush.bf16.msra.mxu0 %v1152
        %1438 = vmatpush.bf16.msra.mxu0 %v1150
        %1439 = vmatpush.bf16.msra.mxu0 %v1148
        %1440 = vmatpush.bf16.msra.mxu0 %v1146
        %1441 = vmatpush.bf16.msra.mxu0 %v1144
        %1442 = vmatpush.bf16.msra.mxu0 %v1142
        %1443 = vmatmul.bf16.gmra.mxu0 %v507
        %v1444 = vpop.f32.mrf.mxu0
        %v1445 = vadd.f32 %v1432, %v1444
        %v1446 = vpop.f32.mrf.mxu0
        %1447 = vdwg.mxu0
        %1448 = vmatpush.bf16.msra.mxu0 %v1013
        %1449 = vmatpush.bf16.msra.mxu0 %v1011
        %1450 = vmatpush.bf16.msra.mxu0 %v1009
        %1451 = vmatpush.bf16.msra.mxu0 %v1007
        %1452 = vmatpush.bf16.msra.mxu0 %v1005
        %1453 = vmatpush.bf16.msra.mxu0 %v1003
        %1454 = vmatpush.bf16.msra.mxu0 %v1001
        %1455 = vmatpush.bf16.msra.mxu0 %v999
        %1456 = vmatmul.bf16.gmra.mxu0 %v498
        %v1457 = vpop.f32.mrf.mxu0
        %v1458 = vadd.f32 %v480, %v1457
        %v1459 = vpop.f32.mrf.mxu0
        %1460 = vdwg.mxu0
        %1461 = vmatpush.bf16.msra.mxu0 %v1029
        %1462 = vmatpush.bf16.msra.mxu0 %v1027
        %1463 = vmatpush.bf16.msra.mxu0 %v1025
        %1464 = vmatpush.bf16.msra.mxu0 %v1023
        %1465 = vmatpush.bf16.msra.mxu0 %v1021
        %1466 = vmatpush.bf16.msra.mxu0 %v1019
        %1467 = vmatpush.bf16.msra.mxu0 %v1017
        %1468 = vmatpush.bf16.msra.mxu0 %v1015
        %1469 = vmatmul.bf16.gmra.mxu0 %v499
        %v1470 = vpop.f32.mrf.mxu0
        %v1471 = vadd.f32 %v1458, %v1470
        %v1472 = vpop.f32.mrf.mxu0
        %1473 = vdwg.mxu0
        %1474 = vmatpush.bf16.msra.mxu0 %v1045
        %1475 = vmatpush.bf16.msra.mxu0 %v1043
        %1476 = vmatpush.bf16.msra.mxu0 %v1041
        %1477 = vmatpush.bf16.msra.mxu0 %v1039
        %1478 = vmatpush.bf16.msra.mxu0 %v1037
        %1479 = vmatpush.bf16.msra.mxu0 %v1035
        %1480 = vmatpush.bf16.msra.mxu0 %v1033
        %1481 = vmatpush.bf16.msra.mxu0 %v1031
        %1482 = vmatmul.bf16.gmra.mxu0 %v500
        %v1483 = vpop.f32.mrf.mxu0
        %v1484 = vadd.f32 %v1471, %v1483
        %v1485 = vpop.f32.mrf.mxu0
        %1486 = vdwg.mxu0
        %1487 = vmatpush.bf16.msra.mxu0 %v1061
        %1488 = vmatpush.bf16.msra.mxu0 %v1059
        %1489 = vmatpush.bf16.msra.mxu0 %v1057
        %1490 = vmatpush.bf16.msra.mxu0 %v1055
        %1491 = vmatpush.bf16.msra.mxu0 %v1053
        %1492 = vmatpush.bf16.msra.mxu0 %v1051
        %1493 = vmatpush.bf16.msra.mxu0 %v1049
        %1494 = vmatpush.bf16.msra.mxu0 %v1047
        %1495 = vmatmul.bf16.gmra.mxu0 %v501
        %v1496 = vpop.f32.mrf.mxu0
        %v1497 = vadd.f32 %v1484, %v1496
        %v1498 = vpop.f32.mrf.mxu0
        %1499 = vdwg.mxu0
        %1500 = vmatpush.bf16.msra.mxu0 %v1077
        %1501 = vmatpush.bf16.msra.mxu0 %v1075
        %1502 = vmatpush.bf16.msra.mxu0 %v1073
        %1503 = vmatpush.bf16.msra.mxu0 %v1071
        %1504 = vmatpush.bf16.msra.mxu0 %v1069
        %1505 = vmatpush.bf16.msra.mxu0 %v1067
        %1506 = vmatpush.bf16.msra.mxu0 %v1065
        %1507 = vmatpush.bf16.msra.mxu0 %v1063
        %1508 = vmatmul.bf16.gmra.mxu0 %v502
        %v1509 = vpop.f32.mrf.mxu0
        %v1510 = vadd.f32 %v1497, %v1509
        %v1511 = vpop.f32.mrf.mxu0
        %1512 = vdwg.mxu0
        %1513 = vmatpush.bf16.msra.mxu0 %v1093
        %1514 = vmatpush.bf16.msra.mxu0 %v1091
        %1515 = vmatpush.bf16.msra.mxu0 %v1089
        %1516 = vmatpush.bf16.msra.mxu0 %v1087
        %1517 = vmatpush.bf16.msra.mxu0 %v1085
        %1518 = vmatpush.bf16.msra.mxu0 %v1083
        %1519 = vmatpush.bf16.msra.mxu0 %v1081
        %1520 = vmatpush.bf16.msra.mxu0 %v1079
        %1521 = vmatmul.bf16.gmra.mxu0 %v503
        %v1522 = vpop.f32.mrf.mxu0
        %v1523 = vadd.f32 %v1510, %v1522
        %v1524 = vpop.f32.mrf.mxu0
        %1525 = vdwg.mxu0
        %1526 = vmatpush.bf16.msra.mxu0 %v1109
        %1527 = vmatpush.bf16.msra.mxu0 %v1107
        %1528 = vmatpush.bf16.msra.mxu0 %v1105
        %1529 = vmatpush.bf16.msra.mxu0 %v1103
        %1530 = vmatpush.bf16.msra.mxu0 %v1101
        %1531 = vmatpush.bf16.msra.mxu0 %v1099
        %1532 = vmatpush.bf16.msra.mxu0 %v1097
        %1533 = vmatpush.bf16.msra.mxu0 %v1095
        %1534 = vmatmul.bf16.gmra.mxu0 %v504
        %v1535 = vpop.f32.mrf.mxu0
        %v1536 = vadd.f32 %v1523, %v1535
        %v1537 = vpop.f32.mrf.mxu0
        %1538 = vdwg.mxu0
        %1539 = vmatpush.bf16.msra.mxu0 %v1125
        %1540 = vmatpush.bf16.msra.mxu0 %v1123
        %1541 = vmatpush.bf16.msra.mxu0 %v1121
        %1542 = vmatpush.bf16.msra.mxu0 %v1119
        %1543 = vmatpush.bf16.msra.mxu0 %v1117
        %1544 = vmatpush.bf16.msra.mxu0 %v1115
        %1545 = vmatpush.bf16.msra.mxu0 %v1113
        %1546 = vmatpush.bf16.msra.mxu0 %v1111
        %1547 = vmatmul.bf16.gmra.mxu0 %v505
        %v1548 = vpop.f32.mrf.mxu0
        %v1549 = vadd.f32 %v1536, %v1548
        %v1550 = vpop.f32.mrf.mxu0
        %1551 = vdwg.mxu0
        %1552 = vmatpush.bf16.msra.mxu0 %v1141
        %1553 = vmatpush.bf16.msra.mxu0 %v1139
        %1554 = vmatpush.bf16.msra.mxu0 %v1137
        %1555 = vmatpush.bf16.msra.mxu0 %v1135
        %1556 = vmatpush.bf16.msra.mxu0 %v1133
        %1557 = vmatpush.bf16.msra.mxu0 %v1131
        %1558 = vmatpush.bf16.msra.mxu0 %v1129
        %1559 = vmatpush.bf16.msra.mxu0 %v1127
        %1560 = vmatmul.bf16.gmra.mxu0 %v506
        %v1561 = vpop.f32.mrf.mxu0
        %v1562 = vadd.f32 %v1549, %v1561
        %v1563 = vpop.f32.mrf.mxu0
        %1564 = vdwg.mxu0
        %1565 = vmatpush.bf16.msra.mxu0 %v1157
        %1566 = vmatpush.bf16.msra.mxu0 %v1155
        %1567 = vmatpush.bf16.msra.mxu0 %v1153
        %1568 = vmatpush.bf16.msra.mxu0 %v1151
        %1569 = vmatpush.bf16.msra.mxu0 %v1149
        %1570 = vmatpush.bf16.msra.mxu0 %v1147
        %1571 = vmatpush.bf16.msra.mxu0 %v1145
        %1572 = vmatpush.bf16.msra.mxu0 %v1143
        %1573 = vmatmul.bf16.gmra.mxu0 %v507
        %v1574 = vpop.f32.mrf.mxu0
        %v1575 = vadd.f32 %v1562, %v1574
        %v1576 = vpop.f32.mrf.mxu0
        %1577 = vdwg.mxu0
        %v1578 = vmax.f32 %v1445, 0.0
        %v1579 = vmax.f32 %v1575, 0.0
        %1580 = vst [vmem:[%s273] sm:$0xff] %v1578
        %1581 = vst [vmem:[%s273 + $0x8] sm:$0xff] %v1579
        %s1582 = smul.u32 %s30, 256
        %v1583 = vpack.c.bf16 %v1579, %v1578
        %s1584 = sshra.s32 %s1582, 7
        %s1585 = sand.u32 %s1582, 127
        %s1586 = smul.addr %s1584, 4
        %s1587 = scalar_lea.vmem [#allocation3], %s1586
        %1588 = vst [vmem:[%s1587] sm:$0xff] %v1583
        %s1589 = sand.u32 %s134, 1
        %s1590 = scalar_lea.sflag [#allocation6], %s1589
        %s1591 = sand.u32 %s134, 1
        %s1592 = smul.addr %s1591, 16
        %s1593 = scalar_lea.vmem [#allocation9], %s1592
        // Predicated region
        $region49: #{test_model_forward.1} parent=31 // pred_check
          %p1594 = pneg %p144
        $region50: #{test_model_forward.1} parent=31 // pred_check_branch
          %1596 = sbr.rel (%p1594) target = $region52
        $region51: #{test_model_forward.1} parent=31 // pred_region
          %s1597 = smul.u32 2, %s30
          %1599 = vsyncadd %s1590, 0
          %s1600 = smul.addr %s28, 10
          %s1601 = sadd.s32 %s1597, %s1600
          %s1602 = smul.addr %s1601, 8
          %s1603 = scalar_lea.hbm %s3, %s1602
          %s1605 = sshll.u32 %s1593, 4
          %s1606 = int_to_ptr.vmem [resolvable:$true] %s1605
          %s1607 = sshll.u32 %s1603, 4
          %s1608 = int_to_ptr.hbm [resolvable:$true] %s1607
          %1610 = dma.vmem_to_hbm [thread:$0]  %s1606, 256, %s1608, %s1590
        $region52: #{test_model_forward.1} parent=31 // pred_fallthru
          _
      $region32: #{test_model_forward.1} parent=5 // pred_fallthru
        _
      %p1611 = scmp.le.s32.totalorder 2, %s18
      // Predicated region
      $region53: #{test_model_forward.1} parent=5 // pred_check
        %p1612 = pneg %p1611
      $region54: #{test_model_forward.1} parent=5 // pred_check_branch
        %1614 = sbr.rel (%p1612) target = $region56
      $region55: #{test_model_forward.1} parent=5 // pred_region
        %s1615 = ssub.s32 %s18, 2
        // Predicated region
        $region57: #{test_model_forward.1} parent=55 // pred_check
          %p1616 = pneg %p150
        $region58: #{test_model_forward.1} parent=55 // pred_check_branch
          %1618 = sbr.rel (%p1616) target = $region60
        $region59: #{test_model_forward.1} parent=55 // pred_region
          %s1619 = sand.u32 %s135, 1
          %s1620 = scalar_lea.sflag [#allocation6], %s1619
          %s1621 = sand.u32 %s135, 1
          %s1622 = smul.addr %s1621, 16
          %s1623 = scalar_lea.vmem [#allocation9], %s1622
          %1625 = dma.done %s1620, 256
        $region60: #{test_model_forward.1} parent=55 // pred_fallthru
          _
      $region56: #{test_model_forward.1} parent=5 // pred_fallthru
        _
    $region6: #{test_model_forward.1} parent=1 // loop_footer
      %s22 = sadd.s32 1, %s18
    $region7: #{test_model_forward.1} parent=1 // loop_footer_branch
      %17 = sbr.rel target = $region3
    $region8: #{test_model_forward.1} parent=1 // loop_exit
      _
    %1626 = vsyncpa [#allocation5], 1
    %s1627 = scalar_lea.sflag [#allocation5], 1
    %1628 = vsyncpa %s1627, 1
    %1629 = vsyncpa [#allocation8], 1
    %s1630 = scalar_lea.sflag [#allocation8], 1
    %1631 = vsyncpa %s1630, 1
    %1632 = vsyncpa [#allocation6], 1
    %s1633 = scalar_lea.sflag [#allocation6], 1
    %1634 = vsyncpa %s1633, 1

</llo_original>
